<compile_context>
chip_gen: v5e
topology: v5e:2x2
jax: 0.10.0
libtpu: 0.0.40
codegen_flags: <defaults>
</compile_context>

<pallas_src>
import jax
import jax.numpy as jnp
from jax.experimental import pallas as pl
from jax.experimental.pallas import tpu as pltpu


def _round_up(a, m):
    return ((a + m - 1) // m) * m


def residual_kernel(x_ref, w_ref, b_ref, o_ref):
    # x_ref: (tm, Hp)   w_ref: (Hp, tn)   b_ref: (1, tn) f32   o_ref: (tm, tn)
    tn = o_ref.shape[-1]
    col0 = pl.multiple_of(pl.program_id(1) * tn, 128)

    x = x_ref[...]
    # fn(x): Linear projection on the MXU, f32 accumulation.
    y = jnp.dot(x, w_ref[...], preferred_element_type=jnp.float32)
    y = y + b_ref[...]  # bias already f32 (pre-cast in the wrapper)
    # residual add: the tn columns of x that match this output tile.
    y = y + x_ref[:, pl.ds(col0, tn)].astype(jnp.float32)
    o_ref[...] = y.astype(o_ref.dtype)


def residual_forward(x, w, b, *, tm=256, tn=512):
    """out = x @ w + b + x, fused in one Pallas kernel.

    x: (B, S, H)   w: (H, H)   b: (H,)
    """
    B, S, H = x.shape
    R = B * S

    # ---- tile / padding selection ------------------------------------------
    # Hidden dim padded to a lane-dense multiple of 128 (no-op when H%128==0).
    Hp = _round_up(H, 128)
    # Row tile: multiple of 8 sublanes, capped by the requested tm; rows are
    # zero-padded so tm divides them exactly (handles ragged B*S).
    tm = min(tm, _round_up(R, 8))
    Rp = _round_up(R, tm)
    # Output-column tile: a multiple of 128 that divides Hp.
    if Hp % 512 == 0 and tn >= 512:
        tn = 512
    elif Hp % 256 == 0 and tn >= 256:
        tn = 256
    else:
        tn = 128
    tn = min(tn, Hp)

    # ---- operand prep --------------------------------------------------------
    x2 = x.reshape(R, H)
    if (Rp, Hp) != (R, H):
        x2 = jnp.pad(x2, ((0, Rp - R), (0, Hp - H)))
    w2 = w if Hp == H else jnp.pad(w, ((0, Hp - H), (0, Hp - H)))
    b2 = jnp.pad(b.astype(jnp.float32), (0, Hp - H)).reshape(1, Hp)

    grid = (Rp // tm, Hp // tn)

    # ---- explicit VMEM budget: double-buffered x/w/b/out tiles + headroom ----
    vmem_bytes = (2 * tm * Hp * x2.dtype.itemsize      # x tile (double buffer)
                  + 2 * Hp * tn * w2.dtype.itemsize    # weight column tile
                  + 2 * 8 * tn * 4                     # bias (sublane-padded)
                  + 2 * tm * tn * x2.dtype.itemsize)   # output tile
    vmem_limit = int(min(max(vmem_bytes + (8 << 20), 32 << 20), 100 << 20))

    cost = pl.CostEstimate(
        flops=2 * Rp * Hp * Hp + 2 * Rp * Hp,
        bytes_accessed=(x2.size * x2.dtype.itemsize
                        + grid[0] * w2.size * w2.dtype.itemsize
                        + grid[0] * b2.size * 4
                        + Rp * Hp * x2.dtype.itemsize),
        transcendentals=0,
    )

    out2 = pl.pallas_call(
        residual_kernel,
        out_shape=jax.ShapeDtypeStruct((Rp, Hp), x.dtype),
        grid_spec=pltpu.PrefetchScalarGridSpec(
            num_scalar_prefetch=0,
            grid=grid,
            in_specs=[
                pl.BlockSpec((tm, Hp), lambda i, j: (i, 0)),   # x row tile (full K)
                pl.BlockSpec((Hp, tn), lambda i, j: (0, j)),   # weight column tile
                pl.BlockSpec((1, tn), lambda i, j: (0, j)),    # bias column tile
            ],
            out_specs=pl.BlockSpec((tm, tn), lambda i, j: (i, j)),
        ),
        compiler_params=pltpu.CompilerParams(
            dimension_semantics=("parallel", "parallel"),
            vmem_limit_bytes=vmem_limit,
        ),
        cost_estimate=cost,
    )(x2, w2, b2)

    return out2[:R, :H].reshape(B, S, H)


if __name__ == "__main__":
    B, S, H = 2, 8, 32  # batch, seq, hidden (small demo shape)

    key = jax.random.PRNGKey(0)
    kx, kw, kb = jax.random.split(key, 3)
    x = jax.random.normal(kx, (B, S, H), dtype=jnp.float32)
    # deterministic parameter init for the wrapped fn (Linear H -> H)
    w = jax.random.normal(kw, (H, H), dtype=jnp.float32) / jnp.sqrt(H)
    b = jax.random.normal(kb, (H,), dtype=jnp.float32) * 0.01

    out = residual_forward(x, w, b)
    jax.block_until_ready(out)

    # reference: fn(x) + x in plain JAX
    ref = jnp.einsum("bsh,hk->bsk", x, w) + b + x
    assert out.shape == x.shape and out.dtype == x.dtype
    assert jnp.allclose(out, ref, atol=1e-5, rtol=1e-5)

    print("KERNEL_OK")
</pallas_src>

<mosaic_0001>
module attributes {stable_mosaic.version = 11 : i64} {
  func.func @residual_kernel(%arg0: i32, %arg1: i32, %arg2: memref<16x128xf32, #tpu.memory_space<vmem>>, %arg3: memref<128x128xf32, #tpu.memory_space<vmem>>, %arg4: memref<1x128xf32, #tpu.memory_space<vmem>>, %arg5: memref<16x128xf32, #tpu.memory_space<vmem>>) attributes {dimension_semantics = [#tpu.dimension_semantics<parallel>, #tpu.dimension_semantics<parallel>], iteration_bounds = array<i64: 1, 1>, scalar_prefetch = 0 : i64, scratch_operands = 0 : i64, tpu.core_type = #tpu.core_type<tc>, window_params = [{transform_indices = @transform_0, window_bounds = array<i64: 16, 128>}, {transform_indices = @transform_1, window_bounds = array<i64: 128, 128>}, {transform_indices = @transform_2, window_bounds = array<i64: 1, 128>}, {transform_indices = @transform_3, window_bounds = array<i64: 16, 128>}]} {
    %c128_i32 = arith.constant 128 : i32
    %0 = arith.muli %arg1, %c128_i32 : i32
    %1 = tpu.assume_multiple %0, 128 : i32
    %c0 = arith.constant 0 : index
    %c0_0 = arith.constant 0 : index
    %2 = vector.load %arg2[%c0, %c0_0] : memref<16x128xf32, #tpu.memory_space<vmem>>, vector<16x128xf32>
    %c0_1 = arith.constant 0 : index
    %c0_2 = arith.constant 0 : index
    %3 = vector.load %arg3[%c0_1, %c0_2] : memref<128x128xf32, #tpu.memory_space<vmem>>, vector<128x128xf32>
    %cst = arith.constant dense<0.000000e+00> : vector<16x128xf32>
    %4 = tpu.matmul %2, %3, %cst {dimension_numbers = #tpu.dot_dimension_numbers<[1], [0], [0], [1], [0, 0, 1, 1], [], []>} : vector<16x128xf32>, vector<128x128xf32>, vector<16x128xf32> -> vector<16x128xf32>
    %c0_3 = arith.constant 0 : index
    %c0_4 = arith.constant 0 : index
    %5 = vector.load %arg4[%c0_3, %c0_4] : memref<1x128xf32, #tpu.memory_space<vmem>>, vector<1x128xf32>
    %6 = vector.broadcast %5 : vector<1x128xf32> to vector<16x128xf32>
    %7 = arith.addf %4, %6 : vector<16x128xf32>
    %c0_5 = arith.constant 0 : index
    %8 = arith.index_cast %1 : i32 to index
    %9 = vector.load %arg2[%c0_5, %8] : memref<16x128xf32, #tpu.memory_space<vmem>>, vector<16x128xf32>
    %10 = arith.addf %7, %9 : vector<16x128xf32>
    %c0_6 = arith.constant 0 : index
    %c0_7 = arith.constant 0 : index
    %11 = vector.load %arg5[%c0_6, %c0_7] : memref<16x128xf32, #tpu.memory_space<vmem>>, vector<16x128xf32>
    tpu.vector_store %arg5[%c0_6, %c0_7], %10 {strides = array<i32>} : memref<16x128xf32, #tpu.memory_space<vmem>>, vector<16x128xf32>,
    return
  }
  func.func @transform_0(%arg0: i32, %arg1: i32) -> (i32, i32) {
    %c0_i32 = arith.constant 0 : i32
    %c0_i32_0 = arith.constant 0 : i32
    return %arg0, %c0_i32 : i32, i32
  }
  func.func @transform_1(%arg0: i32, %arg1: i32) -> (i32, i32) {
    %c0_i32 = arith.constant 0 : i32
    %c0_i32_0 = arith.constant 0 : i32
    return %c0_i32, %arg1 : i32, i32
  }
  func.func @transform_2(%arg0: i32, %arg1: i32) -> (i32, i32) {
    %c0_i32 = arith.constant 0 : i32
    %c0_i32_0 = arith.constant 0 : i32
    return %c0_i32, %arg1 : i32, i32
  }
  func.func @transform_3(%arg0: i32, %arg1: i32) -> (i32, i32) {
    %c0_i32 = arith.constant 0 : i32
    return %arg0, %arg1 : i32, i32
  }
}

</mosaic_0001>

<llo_original>
// kernel: tpu_custom_call.1
$region0: #{tpu_custom_call.1}
  #allocation0 [shape = 'u32[]', space=smem, size = 0x4, offset = 0x4, fixed_abs, tag = 'smem constant byte address 0x4 - core index']
  #allocation1 [shape = 'u32[72,128]{1,0:T(1,128)}', space=vmem, size = 0x9000, scoped, tag = 'internal scratch']
  %s0 = inlined_call_operand.hbm [shape: f32[16,128], index: 0, kind: input, shape index: {}]
  %s1 = inlined_call_operand.hbm [shape: f32[128,128], index: 1, kind: input, shape index: {}]
  %s2 = inlined_call_operand.vmem [shape: f32[1,128], index: 2, kind: input, shape index: {}]
  %s3 = inlined_call_operand.hbm [shape: f32[16,128], index: 3, kind: output, shape index: {}]
  %s4 = sld [smem:[#allocation0]]
  $region30: #{tpu_custom_call.1} parent=0
    _
  %s6 = ssub.s32 1, %s4
  %s7 = scalar_select 0, %s6, %s4
  $region1: #{tpu_custom_call.1} parent=0
    #allocation2 [shape = 'u8[8192]{0}', space=vmem, size = 0x2000, scoped, tag = 'input window, operand 0, single buffered']
    #allocation3 [shape = 's32[1]{0}', space=sflag, size = 0x4, scoped, tag = 'scoped memory for tpu_custom_call.1']
    #allocation4 [shape = 's32[1]{0}', space=sflag, size = 0x4, scoped, tag = 'scoped memory for tpu_custom_call.1']
    #allocation5 [shape = 'u8[65536]{0}', space=vmem, size = 0x10000, scoped, tag = 'input window, operand 1, single buffered']
    #allocation6 [shape = 's32[1]{0}', space=sflag, size = 0x4, scoped, tag = 'scoped memory for tpu_custom_call.1']
    #allocation7 [shape = 'u8[8192]{0}', space=vmem, size = 0x2000, scoped, tag = 'output window, operand 0, single buffered']
    %8 = vsyncpa [#allocation3], 0
    %9 = vsyncpa [#allocation6], 0
    %10 = vsyncpa [#allocation4], 0
    // Predicated region
    $region2: #{tpu_custom_call.1} parent=1 // pred_check
      _
    $region3: #{tpu_custom_call.1} parent=1 // pred_check_branch
      %12 = sbr.rel (0) target = $region5
    $region4: #{tpu_custom_call.1} parent=1 // pred_region
      %14 = vsyncadd [#allocation3], 0
      %s15 = sshll.u32 %s0, 4
      %s16 = int_to_ptr.hbm [resolvable:$true] %s15
      %s17 = sshll.u32 [#allocation2], 4
      %s18 = int_to_ptr.vmem [resolvable:$true] %s17
      %23 = dma.hbm_to_vmem [thread:$0]  %s16, 256, %s18, [#allocation3], 128, 128, 8
    $region5: #{tpu_custom_call.1} parent=1 // pred_fallthru
      _
    // Predicated region
    $region6: #{tpu_custom_call.1} parent=1 // pred_check
      _
    $region7: #{tpu_custom_call.1} parent=1 // pred_check_branch
      %25 = sbr.rel (0) target = $region9
    $region8: #{tpu_custom_call.1} parent=1 // pred_region
      %27 = vsyncadd [#allocation6], 0
      %s28 = sshll.u32 %s1, 4
      %s29 = int_to_ptr.hbm [resolvable:$true] %s28
      %s30 = sshll.u32 [#allocation5], 4
      %s31 = int_to_ptr.vmem [resolvable:$true] %s30
      %36 = dma.hbm_to_vmem [thread:$0]  %s29, 2048, %s31, [#allocation6], 128, 128, 8
    $region9: #{tpu_custom_call.1} parent=1 // pred_fallthru
      _
    // Predicated region
    $region10: #{tpu_custom_call.1} parent=1 // pred_check
      _
    $region11: #{tpu_custom_call.1} parent=1 // pred_check_branch
      %38 = sbr.rel (0) target = $region13
    $region12: #{tpu_custom_call.1} parent=1 // pred_region
      _
    $region13: #{tpu_custom_call.1} parent=1 // pred_fallthru
      _
    // Predicated region
    $region14: #{tpu_custom_call.1} parent=1 // pred_check
      _
    $region15: #{tpu_custom_call.1} parent=1 // pred_check_branch
      %40 = sbr.rel (0) target = $region17
    $region16: #{tpu_custom_call.1} parent=1 // pred_region
      %42 = dma.done [#allocation3], 256
    $region17: #{tpu_custom_call.1} parent=1 // pred_fallthru
      _
    // Predicated region
    $region18: #{tpu_custom_call.1} parent=1 // pred_check
      _
    $region19: #{tpu_custom_call.1} parent=1 // pred_check_branch
      %44 = sbr.rel (0) target = $region21
    $region20: #{tpu_custom_call.1} parent=1 // pred_region
      %46 = dma.done [#allocation6], 2048
    $region21: #{tpu_custom_call.1} parent=1 // pred_fallthru
      _
    %s47 = smul.u32 0, 128
    %v48 = vld [vmem:[#allocation2] sm:$0xff]
    %v49 = vld [vmem:[#allocation2 + $0x8] sm:$0xff]
    %v50 = vld [vmem:[#allocation5] sm:$0xff]
    %v51 = vld [vmem:[#allocation5 + $0x8] sm:$0xff]
    %v52 = vld [vmem:[#allocation5 + $0x10] sm:$0xff]
    %v53 = vld [vmem:[#allocation5 + $0x18] sm:$0xff]
    %v54 = vld [vmem:[#allocation5 + $0x20] sm:$0xff]
    %v55 = vld [vmem:[#allocation5 + $0x28] sm:$0xff]
    %v56 = vld [vmem:[#allocation5 + $0x30] sm:$0xff]
    %v57 = vld [vmem:[#allocation5 + $0x38] sm:$0xff]
    %v58 = vld [vmem:[#allocation5 + $0x40] sm:$0xff]
    %v59 = vld [vmem:[#allocation5 + $0x48] sm:$0xff]
    %v60 = vld [vmem:[#allocation5 + $0x50] sm:$0xff]
    %v61 = vld [vmem:[#allocation5 + $0x58] sm:$0xff]
    %v62 = vld [vmem:[#allocation5 + $0x60] sm:$0xff]
    %v63 = vld [vmem:[#allocation5 + $0x68] sm:$0xff]
    %v64 = vld [vmem:[#allocation5 + $0x70] sm:$0xff]
    %v65 = vld [vmem:[#allocation5 + $0x78] sm:$0xff]
    %v66 = vld [vmem:[%s2] sm:$0x1]
    %v68 = vperm.slane %v66, 0
    %70 = vmatpush.msra.mxu0 %v65
    %71 = vmatpush.msra.mxu0 %v64
    %72 = vmatpush.msra.mxu0 %v63
    %73 = vmatpush.msra.mxu0 %v62
    %74 = vmatpush.msra.mxu0 %v61
    %75 = vmatpush.msra.mxu0 %v60
    %76 = vmatpush.msra.mxu0 %v59
    %77 = vmatpush.msra.mxu0 %v58
    %78 = vmatpush.msra.mxu0 %v57
    %79 = vmatpush.msra.mxu0 %v56
    %80 = vmatpush.msra.mxu0 %v55
    %81 = vmatpush.msra.mxu0 %v54
    %82 = vmatpush.msra.mxu0 %v53
    %83 = vmatpush.msra.mxu0 %v52
    %84 = vmatpush.msra.mxu0 %v51
    %85 = vmatpush.msra.mxu0 %v50
    %86 = vmatmul.f32.gmra.mxu0 %v48
    %v87 = vpop.f32.mrf.mxu0
    %v88 = vadd.f32 %v68, %v87
    %89 = vmatmul.f32.gmra.mxu0 %v49
    %v90 = vpop.f32.mrf.mxu0
    %v91 = vadd.f32 %v68, %v90
    %92 = vdwg.mxu0
    %s93 = sshra.s32 %s47, 7
    %s94 = sand.u32 %s47, 127
    %s95 = scalar_lea.vmem [#allocation2], %s93
    %v96 = vld [vmem:[%s95] sm:$0xff]
    %v97 = vld [vmem:[%s95 + $0x8] sm:$0xff]
    %v98 = vadd.f32 %v88, %v96
    %v99 = vadd.f32 %v91, %v97
    %100 = vst [vmem:[#allocation7] sm:$0xff] %v98
    %101 = vst [vmem:[#allocation7 + $0x8] sm:$0xff] %v99
    // Predicated region
    $region22: #{tpu_custom_call.1} parent=1 // pred_check
      _
    $region23: #{tpu_custom_call.1} parent=1 // pred_check_branch
      %103 = sbr.rel (0) target = $region25
    $region24: #{tpu_custom_call.1} parent=1 // pred_region
      %105 = vsyncadd [#allocation4], 0
      %s106 = sshll.u32 [#allocation7], 4
      %s107 = int_to_ptr.vmem [resolvable:$true] %s106
      %s108 = sshll.u32 %s3, 4
      %s109 = int_to_ptr.hbm [resolvable:$true] %s108
      %114 = dma.vmem_to_hbm [thread:$0]  %s107, 256, %s109, [#allocation4], 128, 128, 8
    $region25: #{tpu_custom_call.1} parent=1 // pred_fallthru
      _
    // Predicated region
    $region26: #{tpu_custom_call.1} parent=1 // pred_check
      _
    $region27: #{tpu_custom_call.1} parent=1 // pred_check_branch
      %116 = sbr.rel (0) target = $region29
    $region28: #{tpu_custom_call.1} parent=1 // pred_region
      %118 = dma.done [#allocation4], 256
    $region29: #{tpu_custom_call.1} parent=1 // pred_fallthru
      _
    %119 = vsyncpa [#allocation3], 1
    %120 = vsyncpa [#allocation6], 1
    %121 = vsyncpa [#allocation4], 1

</llo_original>
